<compile_context>
chip_gen: v6e
topology: v6e:2x2x1
jax: 0.10.0
libtpu: 0.0.40
codegen_flags: <defaults>
</compile_context>

<pallas_src>
import functools

import jax
import jax.numpy as jnp
from jax import lax
from jax.experimental import pallas as pl
from jax.experimental.pallas import tpu as pltpu


def _round_up(x, m):
    return ((x + m - 1) // m) * m


def _focal_loss_kernel(x_ref, t_ref, o_ref, *, gamma):
    # x_ref: (TM, C) logits tile; t_ref: (TM, 1) int32 targets;
    # o_ref: (1, TM) per-row loss (lane-dense).
    x = x_ref[...].astype(jnp.float32)       # compute in f32 (v5e has no bf16 VPU/EUP)
    t = t_ref[...]                           # (TM, 1) int32

    # Numerically stable log-softmax statistics over the class (lane) dim.
    m = jnp.max(x, axis=-1, keepdims=True)                              # (TM, 1)
    shifted = x - m                                                     # (TM, C)
    lse = jnp.log(jnp.sum(jnp.exp(shifted), axis=-1, keepdims=True))    # (TM, 1)

    # Gather the target-class logit per row with a one-hot mask, *then* do the
    # focal math on the (TM, 1) column only (no full-tile exp / power / mul).
    col = lax.broadcasted_iota(jnp.int32, x.shape, dimension=1)         # (TM, C)
    onehot = (col == t).astype(jnp.float32)                             # (TM, C)
    shifted_t = jnp.sum(shifted * onehot, axis=-1, keepdims=True)       # (TM, 1)

    log_prob_t = shifted_t - lse                                        # (TM, 1)
    prob_t = jnp.exp(log_prob_t)                                        # (TM, 1)
    fp = 1.0 - prob_t

    g = float(gamma)
    if g == int(g) and 0 <= int(g) <= 8:
        # Small-integer gamma (the module default 2.0): repeated multiply on the
        # VPU instead of jnp.power -> exp(g*log(.)) on the single-slot EUP.
        w = jnp.ones_like(fp)
        for _ in range(int(g)):
            w = w * fp
    else:
        w = jnp.power(fp, g)

    loss = -(w * log_prob_t)                                            # (TM, 1)

    # Sublane -> lane relayout (XLU, otherwise idle) so the store is lane-dense.
    o_ref[...] = jnp.transpose(loss).astype(o_ref.dtype)                # (1, TM)


def focal_loss(input_tensor, target_tensor, gamma=2.0, tm=None,
               vmem_budget_bytes=24 * 1024 * 1024):
    """Pallas TPU focal loss. input: (N, C) float, target: (N,) int -> (N,) float."""
    N, C = input_tensor.shape
    out_dtype = input_tensor.dtype
    itemsize = jnp.dtype(input_tensor.dtype).itemsize

    if tm is None:
        # Largest row tile whose double-buffered logits tiles fit the budget
        # (kept v7x-safe), a multiple of 128 so the output block is lane-dense,
        # capped at 2048 rows and at the padded batch size.
        tm = vmem_budget_bytes // max(1, 2 * C * itemsize)
        tm = max(128, min(2048, (tm // 128) * 128))
        tm = min(tm, _round_up(N, 128))
    assert tm % 128 == 0, "row tile must be a multiple of 128"

    n_pad = _round_up(N, tm)
    x = input_tensor
    t = target_tensor.astype(jnp.int32).reshape(N, 1)
    if n_pad != N:
        # Pad rows (zero logits, target 0) compute finite values and are discarded.
        x = jnp.pad(x, ((0, n_pad - N), (0, 0)))
        t = jnp.pad(t, ((0, n_pad - N), (0, 0)))

    # Explicit scoped-VMEM request: double-buffered logits + lane-padded targets
    # + output, with headroom.  Stays well under v7x's 64 MiB physical VMEM.
    vmem_bytes = (2 * tm * C * itemsize      # logits tiles (double-buffered)
                  + 2 * tm * 128 * 4         # (tm, 1) int32 targets, lane-padded
                  + 2 * 8 * tm * 4)          # (1, tm) f32 output, sublane-padded
    vmem_limit = int(min(max(2 * vmem_bytes + (4 << 20), 16 << 20), 48 << 20))

    out = pl.pallas_call(
        functools.partial(_focal_loss_kernel, gamma=gamma),
        out_shape=jax.ShapeDtypeStruct((1, n_pad), out_dtype),
        grid=(n_pad // tm,),
        in_specs=[
            pl.BlockSpec((tm, C), lambda i: (i, 0)),        # logits row tile
            pl.BlockSpec((tm, 1), lambda i: (i, 0)),        # targets row tile
        ],
        out_specs=pl.BlockSpec((1, tm), lambda i: (0, i)),  # lane-dense loss row
        compiler_params=pltpu.CompilerParams(
            dimension_semantics=("parallel",),              # megacore-shardable rows
            vmem_limit_bytes=vmem_limit,
        ),
    )(x, t)
    return out.reshape(n_pad)[:N]


def _focal_loss_ref(x, t, gamma=2.0):
    # Pure-JAX reference (mirrors the PyTorch module exactly, weight=None,
    # reduction='none').
    log_prob = jax.nn.log_softmax(x.astype(jnp.float32), axis=-1)
    prob = jnp.exp(log_prob)
    focal = (1.0 - prob) ** gamma * log_prob
    return -jnp.take_along_axis(focal, t[:, None].astype(jnp.int32), axis=-1)[:, 0]


if __name__ == "__main__":
    # TODO(synk): `weight` (per-class rescaling) is None in the module's default
    # config and is therefore not implemented; out-of-range targets (e.g.
    # PyTorch ignore_index=-100) are not supported, matching nll_loss's contract.
    key = jax.random.PRNGKey(0)
    kx, kt = jax.random.split(key)

    N, C = 8, 16
    x = jax.random.normal(kx, (N, C), dtype=jnp.float32)
    target = jax.random.randint(kt, (N,), 0, C, dtype=jnp.int32)

    loss = focal_loss(x, target, gamma=2.0)
    jax.block_until_ready(loss)
    ref = _focal_loss_ref(x, target, gamma=2.0)
    assert loss.shape == (N,)
    assert jnp.allclose(loss, ref, atol=1e-5, rtol=1e-5), (loss, ref)

    # A slightly larger, ragged case exercises the padding path.
    kx2, kt2 = jax.random.split(jax.random.PRNGKey(1))
    N2, C2 = 300, 32
    x2 = jax.random.normal(kx2, (N2, C2), dtype=jnp.float32)
    t2 = jax.random.randint(kt2, (N2,), 0, C2, dtype=jnp.int32)
    loss2 = focal_loss(x2, t2, gamma=2.0)
    jax.block_until_ready(loss2)
    ref2 = _focal_loss_ref(x2, t2, gamma=2.0)
    assert jnp.allclose(loss2, ref2, atol=1e-5, rtol=1e-5), (loss2, ref2)

    print("KERNEL_OK")
</pallas_src>

<mosaic_0001>
module attributes {stable_mosaic.version = 11 : i64} {
  func.func @_focal_loss_kernel(%arg0: i32, %arg1: memref<128x16xf32, #tpu.memory_space<vmem>>, %arg2: memref<128x1xi32, #tpu.memory_space<vmem>>, %arg3: memref<1x128xf32, #tpu.memory_space<vmem>>) attributes {dimension_semantics = [#tpu.dimension_semantics<parallel>], iteration_bounds = array<i64: 1>, scalar_prefetch = 0 : i64, scratch_operands = 0 : i64, tpu.core_type = #tpu.core_type<tc>, window_params = [{transform_indices = @transform_0, window_bounds = array<i64: 128, 16>}, {transform_indices = @transform_1, window_bounds = array<i64: 128, 1>}, {transform_indices = @transform_2, window_bounds = array<i64: 1, 128>}]} {
    %c0 = arith.constant 0 : index
    %c0_0 = arith.constant 0 : index
    %0 = vector.load %arg1[%c0, %c0_0] : memref<128x16xf32, #tpu.memory_space<vmem>>, vector<128x16xf32>
    %c0_1 = arith.constant 0 : index
    %c0_2 = arith.constant 0 : index
    %1 = vector.load %arg2[%c0_1, %c0_2] : memref<128x1xi32, #tpu.memory_space<vmem>>, vector<128x1xi32>
    %cst = arith.constant dense<0xFF800000> : vector<128xf32>
    %2 = vector.multi_reduction <maximumf>, %0, %cst [1] : vector<128x16xf32> to vector<128xf32>
    %3 = vector.shape_cast %2 : vector<128xf32> to vector<128x1xf32>
    %4 = vector.broadcast %3 : vector<128x1xf32> to vector<128x16xf32>
    %5 = arith.subf %0, %4 : vector<128x16xf32>
    %6 = math.exp %5 : vector<128x16xf32>
    %cst_3 = arith.constant dense<0.000000e+00> : vector<128xf32>
    %7 = vector.multi_reduction <add>, %6, %cst_3 [1] : vector<128x16xf32> to vector<128xf32>
    %8 = vector.shape_cast %7 : vector<128xf32> to vector<128x1xf32>
    %9 = math.log %8 : vector<128x1xf32>
    %10 = tpu.iota {dimensions = array<i32: 1>} : vector<128x16xi32>
    %11 = vector.broadcast %1 : vector<128x1xi32> to vector<128x16xi32>
    %12 = arith.cmpi eq, %10, %11 : vector<128x16xi32>
    %13 = arith.extui %12 : vector<128x16xi1> to vector<128x16xi32>
    %14 = arith.sitofp %13 : vector<128x16xi32> to vector<128x16xf32>
    %15 = arith.mulf %5, %14 : vector<128x16xf32>
    %cst_4 = arith.constant dense<0.000000e+00> : vector<128xf32>
    %16 = vector.multi_reduction <add>, %15, %cst_4 [1] : vector<128x16xf32> to vector<128xf32>
    %17 = vector.shape_cast %16 : vector<128xf32> to vector<128x1xf32>
    %18 = arith.subf %17, %9 : vector<128x1xf32>
    %19 = math.exp %18 : vector<128x1xf32>
    %cst_5 = arith.constant 1.000000e+00 : f32
    %20 = vector.broadcast %cst_5 : f32 to vector<128x1xf32>
    %21 = arith.subf %20, %19 : vector<128x1xf32>
    %cst_6 = arith.constant 1.000000e+00 : f32
    %22 = vector.broadcast %cst_6 : f32 to vector<128x1xf32>
    %23 = arith.mulf %22, %21 : vector<128x1xf32>
    %24 = arith.mulf %23, %21 : vector<128x1xf32>
    %25 = arith.mulf %24, %18 : vector<128x1xf32>
    %cst_7 = arith.constant 0.000000e+00 : f32
    %26 = vector.broadcast %cst_7 : f32 to vector<128x1xf32>
    %27 = arith.subf %26, %25 : vector<128x1xf32>
    %28 = tpu.transpose %27, [1, 0] : vector<128x1xf32> -> vector<1x128xf32>
    %c0_8 = arith.constant 0 : index
    %c0_9 = arith.constant 0 : index
    %29 = vector.load %arg3[%c0_8, %c0_9] : memref<1x128xf32, #tpu.memory_space<vmem>>, vector<1x128xf32>
    tpu.vector_store %arg3[%c0_8, %c0_9], %28 {strides = array<i32>} : memref<1x128xf32, #tpu.memory_space<vmem>>, vector<1x128xf32>,
    return
  }
  func.func @transform_0(%arg0: i32) -> (i32, i32) {
    %c0_i32 = arith.constant 0 : i32
    %c0_i32_0 = arith.constant 0 : i32
    return %arg0, %c0_i32 : i32, i32
  }
  func.func @transform_1(%arg0: i32) -> (i32, i32) {
    %c0_i32 = arith.constant 0 : i32
    %c0_i32_0 = arith.constant 0 : i32
    return %arg0, %c0_i32 : i32, i32
  }
  func.func @transform_2(%arg0: i32) -> (i32, i32) {
    %c0_i32 = arith.constant 0 : i32
    %c0_i32_0 = arith.constant 0 : i32
    return %c0_i32, %arg0 : i32, i32
  }
}

</mosaic_0001>

<llo_original>
// kernel: tpu_custom_call.1
$region0: #{tpu_custom_call.1}
  #allocation0 [shape = 'u32[]', space=smem, size = 0x4, offset = 0x4, fixed_abs, tag = 'smem constant byte address 0x4 - core index']
  #allocation1 [shape = 'u32[144,128]{1,0:T(1,128)}', space=vmem, size = 0x12000, scoped, tag = 'internal scratch']
  %s0 = inlined_call_operand.vmem [shape: f32[128,16], index: 0, kind: input, shape index: {}]
  %s1 = inlined_call_operand.vmem [shape: s32[128,1], index: 1, kind: input, shape index: {}]
  %s2 = inlined_call_operand.hbm [shape: f32[1,128], index: 2, kind: output, shape index: {}]
  %s3 = sld [smem:[#allocation0]]
  $region18: #{tpu_custom_call.1} parent=0
    _
  %s5 = ssub.s32 1, %s3
  %s6 = scalar_select 0, %s5, %s3
  $region1: #{tpu_custom_call.1} parent=0
    #allocation2 [shape = 'u8[512]{0}', space=vmem, size = 0x400, scoped, tag = 'output window, operand 0, single buffered']
    #allocation3 [shape = 's32[1]{0}', space=sflag, size = 0x4, scoped, tag = 'scoped memory for tpu_custom_call.1']
    %7 = vsyncpa [#allocation3], 0
    // Predicated region
    $region2: #{tpu_custom_call.1} parent=1 // pred_check
      _
    $region3: #{tpu_custom_call.1} parent=1 // pred_check_branch
      %9 = sbr.rel (0) target = $region5
    $region4: #{tpu_custom_call.1} parent=1 // pred_region
      _
    $region5: #{tpu_custom_call.1} parent=1 // pred_fallthru
      _
    // Predicated region
    $region6: #{tpu_custom_call.1} parent=1 // pred_check
      _
    $region7: #{tpu_custom_call.1} parent=1 // pred_check_branch
      %11 = sbr.rel (0) target = $region9
    $region8: #{tpu_custom_call.1} parent=1 // pred_region
      _
    $region9: #{tpu_custom_call.1} parent=1 // pred_fallthru
      _
    %v12 = vld [vmem:[%s0] sm:$0xff]
    %v13 = vld [vmem:[%s0 + $0x8] sm:$0xff]
    %v14 = vld [vmem:[%s0 + $0x10] sm:$0xff]
    %v15 = vld [vmem:[%s0 + $0x18] sm:$0xff]
    %v16 = vld [vmem:[%s0 + $0x20] sm:$0xff]
    %v17 = vld [vmem:[%s0 + $0x28] sm:$0xff]
    %v18 = vld [vmem:[%s0 + $0x30] sm:$0xff]
    %v19 = vld [vmem:[%s0 + $0x38] sm:$0xff]
    %v20 = vld [vmem:[%s0 + $0x40] sm:$0xff]
    %v21 = vld [vmem:[%s0 + $0x48] sm:$0xff]
    %v22 = vld [vmem:[%s0 + $0x50] sm:$0xff]
    %v23 = vld [vmem:[%s0 + $0x58] sm:$0xff]
    %v24 = vld [vmem:[%s0 + $0x60] sm:$0xff]
    %v25 = vld [vmem:[%s0 + $0x68] sm:$0xff]
    %v26 = vld [vmem:[%s0 + $0x70] sm:$0xff]
    %v27 = vld [vmem:[%s0 + $0x78] sm:$0xff]
    %v28 = vld [vmem:[%s1] sm:$0xff]
    %v29 = vld [vmem:[%s1 + $0x8] sm:$0xff]
    %v30 = vld [vmem:[%s1 + $0x10] sm:$0xff]
    %v31 = vld [vmem:[%s1 + $0x18] sm:$0xff]
    %v32 = vld [vmem:[%s1 + $0x20] sm:$0xff]
    %v33 = vld [vmem:[%s1 + $0x28] sm:$0xff]
    %v34 = vld [vmem:[%s1 + $0x30] sm:$0xff]
    %v35 = vld [vmem:[%s1 + $0x38] sm:$0xff]
    %v36 = vld [vmem:[%s1 + $0x40] sm:$0xff]
    %v37 = vld [vmem:[%s1 + $0x48] sm:$0xff]
    %v38 = vld [vmem:[%s1 + $0x50] sm:$0xff]
    %v39 = vld [vmem:[%s1 + $0x58] sm:$0xff]
    %v40 = vld [vmem:[%s1 + $0x60] sm:$0xff]
    %v41 = vld [vmem:[%s1 + $0x68] sm:$0xff]
    %v42 = vld [vmem:[%s1 + $0x70] sm:$0xff]
    %v43 = vld [vmem:[%s1 + $0x78] sm:$0xff]
    %vm44 = vcmask 130048
    %v45 = vsel %vm44, %v12, -inf
    %46 = vmax.xlane.f32.xlu0 %v45
    %v47 = vpop.xlane.xlu0 %46
    %v48 = vsel %vm44, %v13, -inf
    %49 = vmax.xlane.f32.xlu0 %v48
    %v50 = vpop.xlane.xlu0 %49
    %v51 = vsel %vm44, %v14, -inf
    %52 = vmax.xlane.f32.xlu0 %v51
    %v53 = vpop.xlane.xlu0 %52
    %v54 = vsel %vm44, %v15, -inf
    %55 = vmax.xlane.f32.xlu0 %v54
    %v56 = vpop.xlane.xlu0 %55
    %v57 = vsel %vm44, %v16, -inf
    %58 = vmax.xlane.f32.xlu0 %v57
    %v59 = vpop.xlane.xlu0 %58
    %v60 = vsel %vm44, %v17, -inf
    %61 = vmax.xlane.f32.xlu0 %v60
    %v62 = vpop.xlane.xlu0 %61
    %v63 = vsel %vm44, %v18, -inf
    %64 = vmax.xlane.f32.xlu0 %v63
    %v65 = vpop.xlane.xlu0 %64
    %v66 = vsel %vm44, %v19, -inf
    %67 = vmax.xlane.f32.xlu0 %v66
    %v68 = vpop.xlane.xlu0 %67
    %v69 = vsel %vm44, %v20, -inf
    %70 = vmax.xlane.f32.xlu0 %v69
    %v71 = vpop.xlane.xlu0 %70
    %v72 = vsel %vm44, %v21, -inf
    %73 = vmax.xlane.f32.xlu0 %v72
    %v74 = vpop.xlane.xlu0 %73
    %v75 = vsel %vm44, %v22, -inf
    %76 = vmax.xlane.f32.xlu0 %v75
    %v77 = vpop.xlane.xlu0 %76
    %v78 = vsel %vm44, %v23, -inf
    %79 = vmax.xlane.f32.xlu0 %v78
    %v80 = vpop.xlane.xlu0 %79
    %v81 = vsel %vm44, %v24, -inf
    %82 = vmax.xlane.f32.xlu0 %v81
    %v83 = vpop.xlane.xlu0 %82
    %v84 = vsel %vm44, %v25, -inf
    %85 = vmax.xlane.f32.xlu0 %v84
    %v86 = vpop.xlane.xlu0 %85
    %v87 = vsel %vm44, %v26, -inf
    %88 = vmax.xlane.f32.xlu0 %v87
    %v89 = vpop.xlane.xlu0 %88
    %v90 = vsel %vm44, %v27, -inf
    %91 = vmax.xlane.f32.xlu0 %v90
    %v92 = vpop.xlane.xlu0 %91
    %v93 = vsub.f32 %v12, %v47
    %v94 = vsub.f32 %v13, %v50
    %v95 = vsub.f32 %v14, %v53
    %v96 = vsub.f32 %v15, %v56
    %v97 = vsub.f32 %v16, %v59
    %v98 = vsub.f32 %v17, %v62
    %v99 = vsub.f32 %v18, %v65
    %v100 = vsub.f32 %v19, %v68
    %v101 = vsub.f32 %v20, %v71
    %v102 = vsub.f32 %v21, %v74
    %v103 = vsub.f32 %v22, %v77
    %v104 = vsub.f32 %v23, %v80
    %v105 = vsub.f32 %v24, %v83
    %v106 = vsub.f32 %v25, %v86
    %v107 = vsub.f32 %v26, %v89
    %v108 = vsub.f32 %v27, %v92
    %v109 = vmul.f32 %v93, 1.442695
    %v110 = vpow.pop %v109
    %v111 = vmul.f32 %v94, 1.442695
    %v112 = vpow.pop %v111
    %v113 = vmul.f32 %v95, 1.442695
    %v114 = vpow.pop %v113
    %v115 = vmul.f32 %v96, 1.442695
    %v116 = vpow.pop %v115
    %v117 = vmul.f32 %v97, 1.442695
    %v118 = vpow.pop %v117
    %v119 = vmul.f32 %v98, 1.442695
    %v120 = vpow.pop %v119
    %v121 = vmul.f32 %v99, 1.442695
    %v122 = vpow.pop %v121
    %v123 = vmul.f32 %v100, 1.442695
    %v124 = vpow.pop %v123
    %v125 = vmul.f32 %v101, 1.442695
    %v126 = vpow.pop %v125
    %v127 = vmul.f32 %v102, 1.442695
    %v128 = vpow.pop %v127
    %v129 = vmul.f32 %v103, 1.442695
    %v130 = vpow.pop %v129
    %v131 = vmul.f32 %v104, 1.442695
    %v132 = vpow.pop %v131
    %v133 = vmul.f32 %v105, 1.442695
    %v134 = vpow.pop %v133
    %v135 = vmul.f32 %v106, 1.442695
    %v136 = vpow.pop %v135
    %v137 = vmul.f32 %v107, 1.442695
    %v138 = vpow.pop %v137
    %v139 = vmul.f32 %v108, 1.442695
    %v140 = vpow.pop %v139
    %v141 = vsel %vm44, %v110, 0.0
    %142 = vadd.xlane.f32.xlu0 %v141
    %v143 = vpop.xlane.xlu0 %142
    %v144 = vsel %vm44, %v112, 0.0
    %145 = vadd.xlane.f32.xlu0 %v144
    %v146 = vpop.xlane.xlu0 %145
    %v147 = vsel %vm44, %v114, 0.0
    %148 = vadd.xlane.f32.xlu0 %v147
    %v149 = vpop.xlane.xlu0 %148
    %v150 = vsel %vm44, %v116, 0.0
    %151 = vadd.xlane.f32.xlu0 %v150
    %v152 = vpop.xlane.xlu0 %151
    %v153 = vsel %vm44, %v118, 0.0
    %154 = vadd.xlane.f32.xlu0 %v153
    %v155 = vpop.xlane.xlu0 %154
    %v156 = vsel %vm44, %v120, 0.0
    %157 = vadd.xlane.f32.xlu0 %v156
    %v158 = vpop.xlane.xlu0 %157
    %v159 = vsel %vm44, %v122, 0.0
    %160 = vadd.xlane.f32.xlu0 %v159
    %v161 = vpop.xlane.xlu0 %160
    %v162 = vsel %vm44, %v124, 0.0
    %163 = vadd.xlane.f32.xlu0 %v162
    %v164 = vpop.xlane.xlu0 %163
    %v165 = vsel %vm44, %v126, 0.0
    %166 = vadd.xlane.f32.xlu0 %v165
    %v167 = vpop.xlane.xlu0 %166
    %v168 = vsel %vm44, %v128, 0.0
    %169 = vadd.xlane.f32.xlu0 %v168
    %v170 = vpop.xlane.xlu0 %169
    %v171 = vsel %vm44, %v130, 0.0
    %172 = vadd.xlane.f32.xlu0 %v171
    %v173 = vpop.xlane.xlu0 %172
    %v174 = vsel %vm44, %v132, 0.0
    %175 = vadd.xlane.f32.xlu0 %v174
    %v176 = vpop.xlane.xlu0 %175
    %v177 = vsel %vm44, %v134, 0.0
    %178 = vadd.xlane.f32.xlu0 %v177
    %v179 = vpop.xlane.xlu0 %178
    %v180 = vsel %vm44, %v136, 0.0
    %181 = vadd.xlane.f32.xlu0 %v180
    %v182 = vpop.xlane.xlu0 %181
    %v183 = vsel %vm44, %v138, 0.0
    %184 = vadd.xlane.f32.xlu0 %v183
    %v185 = vpop.xlane.xlu0 %184
    %v186 = vsel %vm44, %v140, 0.0
    %187 = vadd.xlane.f32.xlu0 %v186
    %v188 = vpop.xlane.xlu0 %187
    %v189 = vlog2.pop %v143
    %v190 = vmul.f32 %v189, 0.6931472
    %v191 = vlog2.pop %v146
    %v192 = vmul.f32 %v191, 0.6931472
    %v193 = vlog2.pop %v149
    %v194 = vmul.f32 %v193, 0.6931472
    %v195 = vlog2.pop %v152
    %v196 = vmul.f32 %v195, 0.6931472
    %v197 = vlog2.pop %v155
    %v198 = vmul.f32 %v197, 0.6931472
    %v199 = vlog2.pop %v158
    %v200 = vmul.f32 %v199, 0.6931472
    %v201 = vlog2.pop %v161
    %v202 = vmul.f32 %v201, 0.6931472
    %v203 = vlog2.pop %v164
    %v204 = vmul.f32 %v203, 0.6931472
    %v205 = vlog2.pop %v167
    %v206 = vmul.f32 %v205, 0.6931472
    %v207 = vlog2.pop %v170
    %v208 = vmul.f32 %v207, 0.6931472
    %v209 = vlog2.pop %v173
    %v210 = vmul.f32 %v209, 0.6931472
    %v211 = vlog2.pop %v176
    %v212 = vmul.f32 %v211, 0.6931472
    %v213 = vlog2.pop %v179
    %v214 = vmul.f32 %v213, 0.6931472
    %v215 = vlog2.pop %v182
    %v216 = vmul.f32 %v215, 0.6931472
    %v217 = vlog2.pop %v185
    %v218 = vmul.f32 %v217, 0.6931472
    %v219 = vlog2.pop %v188
    %v220 = vmul.f32 %v219, 0.6931472
    %v221 = vlaneseq
    %v222 = vand.u32 %v221, 127
    %223 = vset.pattern.permute.xlu0 0
    %224 = vperm.xlu0 %223, %v28
    %v225 = vpop.permute.xlu0 %224
    %226 = vset.pattern.permute.xlu0 0
    %227 = vperm.xlu0 %226, %v29
    %v228 = vpop.permute.xlu0 %227
    %229 = vset.pattern.permute.xlu0 0
    %230 = vperm.xlu0 %229, %v30
    %v231 = vpop.permute.xlu0 %230
    %232 = vset.pattern.permute.xlu0 0
    %233 = vperm.xlu0 %232, %v31
    %v234 = vpop.permute.xlu0 %233
    %235 = vset.pattern.permute.xlu0 0
    %236 = vperm.xlu0 %235, %v32
    %v237 = vpop.permute.xlu0 %236
    %238 = vset.pattern.permute.xlu0 0
    %239 = vperm.xlu0 %238, %v33
    %v240 = vpop.permute.xlu0 %239
    %241 = vset.pattern.permute.xlu0 0
    %242 = vperm.xlu0 %241, %v34
    %v243 = vpop.permute.xlu0 %242
    %244 = vset.pattern.permute.xlu0 0
    %245 = vperm.xlu0 %244, %v35
    %v246 = vpop.permute.xlu0 %245
    %247 = vset.pattern.permute.xlu0 0
    %248 = vperm.xlu0 %247, %v36
    %v249 = vpop.permute.xlu0 %248
    %250 = vset.pattern.permute.xlu0 0
    %251 = vperm.xlu0 %250, %v37
    %v252 = vpop.permute.xlu0 %251
    %253 = vset.pattern.permute.xlu0 0
    %254 = vperm.xlu0 %253, %v38
    %v255 = vpop.permute.xlu0 %254
    %256 = vset.pattern.permute.xlu0 0
    %257 = vperm.xlu0 %256, %v39
    %v258 = vpop.permute.xlu0 %257
    %259 = vset.pattern.permute.xlu0 0
    %260 = vperm.xlu0 %259, %v40
    %v261 = vpop.permute.xlu0 %260
    %262 = vset.pattern.permute.xlu0 0
    %263 = vperm.xlu0 %262, %v41
    %v264 = vpop.permute.xlu0 %263
    %265 = vset.pattern.permute.xlu0 0
    %266 = vperm.xlu0 %265, %v42
    %v267 = vpop.permute.xlu0 %266
    %268 = vset.pattern.permute.xlu0 0
    %269 = vperm.xlu0 %268, %v43
    %v270 = vpop.permute.xlu0 %269
    %vm271 = vcmp.eq.s32.totalorder %v222, %v225
    %vm272 = vcmp.eq.s32.totalorder %v222, %v228
    %vm273 = vcmp.eq.s32.totalorder %v222, %v231
    %vm274 = vcmp.eq.s32.totalorder %v222, %v234
    %vm275 = vcmp.eq.s32.totalorder %v222, %v237
    %vm276 = vcmp.eq.s32.totalorder %v222, %v240
    %vm277 = vcmp.eq.s32.totalorder %v222, %v243
    %vm278 = vcmp.eq.s32.totalorder %v222, %v246
    %vm279 = vcmp.eq.s32.totalorder %v222, %v249
    %vm280 = vcmp.eq.s32.totalorder %v222, %v252
    %vm281 = vcmp.eq.s32.totalorder %v222, %v255
    %vm282 = vcmp.eq.s32.totalorder %v222, %v258
    %vm283 = vcmp.eq.s32.totalorder %v222, %v261
    %vm284 = vcmp.eq.s32.totalorder %v222, %v264
    %vm285 = vcmp.eq.s32.totalorder %v222, %v267
    %vm286 = vcmp.eq.s32.totalorder %v222, %v270
    %v287 = vsel %vm271, 1, 0
    %v288 = vsel %vm272, 1, 0
    %v289 = vsel %vm273, 1, 0
    %v290 = vsel %vm274, 1, 0
    %v291 = vsel %vm275, 1, 0
    %v292 = vsel %vm276, 1, 0
    %v293 = vsel %vm277, 1, 0
    %v294 = vsel %vm278, 1, 0
    %v295 = vsel %vm279, 1, 0
    %v296 = vsel %vm280, 1, 0
    %v297 = vsel %vm281, 1, 0
    %v298 = vsel %vm282, 1, 0
    %v299 = vsel %vm283, 1, 0
    %v300 = vsel %vm284, 1, 0
    %v301 = vsel %vm285, 1, 0
    %v302 = vsel %vm286, 1, 0
    %v303 = vcvt.s32.f32 %v287
    %v304 = vcvt.s32.f32 %v288
    %v305 = vcvt.s32.f32 %v289
    %v306 = vcvt.s32.f32 %v290
    %v307 = vcvt.s32.f32 %v291
    %v308 = vcvt.s32.f32 %v292
    %v309 = vcvt.s32.f32 %v293
    %v310 = vcvt.s32.f32 %v294
    %v311 = vcvt.s32.f32 %v295
    %v312 = vcvt.s32.f32 %v296
    %v313 = vcvt.s32.f32 %v297
    %v314 = vcvt.s32.f32 %v298
    %v315 = vcvt.s32.f32 %v299
    %v316 = vcvt.s32.f32 %v300
    %v317 = vcvt.s32.f32 %v301
    %v318 = vcvt.s32.f32 %v302
    %v319 = vmul.f32 %v93, %v303
    %v320 = vmul.f32 %v94, %v304
    %v321 = vmul.f32 %v95, %v305
    %v322 = vmul.f32 %v96, %v306
    %v323 = vmul.f32 %v97, %v307
    %v324 = vmul.f32 %v98, %v308
    %v325 = vmul.f32 %v99, %v309
    %v326 = vmul.f32 %v100, %v310
    %v327 = vmul.f32 %v101, %v311
    %v328 = vmul.f32 %v102, %v312
    %v329 = vmul.f32 %v103, %v313
    %v330 = vmul.f32 %v104, %v314
    %v331 = vmul.f32 %v105, %v315
    %v332 = vmul.f32 %v106, %v316
    %v333 = vmul.f32 %v107, %v317
    %v334 = vmul.f32 %v108, %v318
    %v335 = vsel %vm44, %v319, 0.0
    %336 = vadd.xlane.f32.xlu0 %v335
    %v337 = vpop.xlane.xlu0 %336
    %v338 = vsel %vm44, %v320, 0.0
    %339 = vadd.xlane.f32.xlu0 %v338
    %v340 = vpop.xlane.xlu0 %339
    %v341 = vsel %vm44, %v321, 0.0
    %342 = vadd.xlane.f32.xlu0 %v341
    %v343 = vpop.xlane.xlu0 %342
    %v344 = vsel %vm44, %v322, 0.0
    %345 = vadd.xlane.f32.xlu0 %v344
    %v346 = vpop.xlane.xlu0 %345
    %v347 = vsel %vm44, %v323, 0.0
    %348 = vadd.xlane.f32.xlu0 %v347
    %v349 = vpop.xlane.xlu0 %348
    %v350 = vsel %vm44, %v324, 0.0
    %351 = vadd.xlane.f32.xlu0 %v350
    %v352 = vpop.xlane.xlu0 %351
    %v353 = vsel %vm44, %v325, 0.0
    %354 = vadd.xlane.f32.xlu0 %v353
    %v355 = vpop.xlane.xlu0 %354
    %v356 = vsel %vm44, %v326, 0.0
    %357 = vadd.xlane.f32.xlu0 %v356
    %v358 = vpop.xlane.xlu0 %357
    %v359 = vsel %vm44, %v327, 0.0
    %360 = vadd.xlane.f32.xlu0 %v359
    %v361 = vpop.xlane.xlu0 %360
    %v362 = vsel %vm44, %v328, 0.0
    %363 = vadd.xlane.f32.xlu0 %v362
    %v364 = vpop.xlane.xlu0 %363
    %v365 = vsel %vm44, %v329, 0.0
    %366 = vadd.xlane.f32.xlu0 %v365
    %v367 = vpop.xlane.xlu0 %366
    %v368 = vsel %vm44, %v330, 0.0
    %369 = vadd.xlane.f32.xlu0 %v368
    %v370 = vpop.xlane.xlu0 %369
    %v371 = vsel %vm44, %v331, 0.0
    %372 = vadd.xlane.f32.xlu0 %v371
    %v373 = vpop.xlane.xlu0 %372
    %v374 = vsel %vm44, %v332, 0.0
    %375 = vadd.xlane.f32.xlu0 %v374
    %v376 = vpop.xlane.xlu0 %375
    %v377 = vsel %vm44, %v333, 0.0
    %378 = vadd.xlane.f32.xlu0 %v377
    %v379 = vpop.xlane.xlu0 %378
    %v380 = vsel %vm44, %v334, 0.0
    %381 = vadd.xlane.f32.xlu0 %v380
    %v382 = vpop.xlane.xlu0 %381
    %v383 = vsub.f32 %v337, %v190
    %v384 = vsub.f32 %v340, %v192
    %v385 = vsub.f32 %v343, %v194
    %v386 = vsub.f32 %v346, %v196
    %v387 = vsub.f32 %v349, %v198
    %v388 = vsub.f32 %v352, %v200
    %v389 = vsub.f32 %v355, %v202
    %v390 = vsub.f32 %v358, %v204
    %v391 = vsub.f32 %v361, %v206
    %v392 = vsub.f32 %v364, %v208
    %v393 = vsub.f32 %v367, %v210
    %v394 = vsub.f32 %v370, %v212
    %v395 = vsub.f32 %v373, %v214
    %v396 = vsub.f32 %v376, %v216
    %v397 = vsub.f32 %v379, %v218
    %v398 = vsub.f32 %v382, %v220
    %v399 = vmul.f32 %v383, 1.442695
    %v400 = vpow.pop %v399
    %v401 = vmul.f32 %v384, 1.442695
    %v402 = vpow.pop %v401
    %v403 = vmul.f32 %v385, 1.442695
    %v404 = vpow.pop %v403
    %v405 = vmul.f32 %v386, 1.442695
    %v406 = vpow.pop %v405
    %v407 = vmul.f32 %v387, 1.442695
    %v408 = vpow.pop %v407
    %v409 = vmul.f32 %v388, 1.442695
    %v410 = vpow.pop %v409
    %v411 = vmul.f32 %v389, 1.442695
    %v412 = vpow.pop %v411
    %v413 = vmul.f32 %v390, 1.442695
    %v414 = vpow.pop %v413
    %v415 = vmul.f32 %v391, 1.442695
    %v416 = vpow.pop %v415
    %v417 = vmul.f32 %v392, 1.442695
    %v418 = vpow.pop %v417
    %v419 = vmul.f32 %v393, 1.442695
    %v420 = vpow.pop %v419
    %v421 = vmul.f32 %v394, 1.442695
    %v422 = vpow.pop %v421
    %v423 = vmul.f32 %v395, 1.442695
    %v424 = vpow.pop %v423
    %v425 = vmul.f32 %v396, 1.442695
    %v426 = vpow.pop %v425
    %v427 = vmul.f32 %v397, 1.442695
    %v428 = vpow.pop %v427
    %v429 = vmul.f32 %v398, 1.442695
    %v430 = vpow.pop %v429
    %v431 = vsub.f32 1.0, %v400
    %v432 = vsub.f32 1.0, %v402
    %v433 = vsub.f32 1.0, %v404
    %v434 = vsub.f32 1.0, %v406
    %v435 = vsub.f32 1.0, %v408
    %v436 = vsub.f32 1.0, %v410
    %v437 = vsub.f32 1.0, %v412
    %v438 = vsub.f32 1.0, %v414
    %v439 = vsub.f32 1.0, %v416
    %v440 = vsub.f32 1.0, %v418
    %v441 = vsub.f32 1.0, %v420
    %v442 = vsub.f32 1.0, %v422
    %v443 = vsub.f32 1.0, %v424
    %v444 = vsub.f32 1.0, %v426
    %v445 = vsub.f32 1.0, %v428
    %v446 = vsub.f32 1.0, %v430
    %v447 = vmul.f32 %v431, %v431
    %v448 = vmul.f32 %v432, %v432
    %v449 = vmul.f32 %v433, %v433
    %v450 = vmul.f32 %v434, %v434
    %v451 = vmul.f32 %v435, %v435
    %v452 = vmul.f32 %v436, %v436
    %v453 = vmul.f32 %v437, %v437
    %v454 = vmul.f32 %v438, %v438
    %v455 = vmul.f32 %v439, %v439
    %v456 = vmul.f32 %v440, %v440
    %v457 = vmul.f32 %v441, %v441
    %v458 = vmul.f32 %v442, %v442
    %v459 = vmul.f32 %v443, %v443
    %v460 = vmul.f32 %v444, %v444
    %v461 = vmul.f32 %v445, %v445
    %v462 = vmul.f32 %v446, %v446
    %v463 = vmul.f32 %v447, %v383
    %v464 = vmul.f32 %v448, %v384
    %v465 = vmul.f32 %v449, %v385
    %v466 = vmul.f32 %v450, %v386
    %v467 = vmul.f32 %v451, %v387
    %v468 = vmul.f32 %v452, %v388
    %v469 = vmul.f32 %v453, %v389
    %v470 = vmul.f32 %v454, %v390
    %v471 = vmul.f32 %v455, %v391
    %v472 = vmul.f32 %v456, %v392
    %v473 = vmul.f32 %v457, %v393
    %v474 = vmul.f32 %v458, %v394
    %v475 = vmul.f32 %v459, %v395
    %v476 = vmul.f32 %v460, %v396
    %v477 = vmul.f32 %v461, %v397
    %v478 = vmul.f32 %v462, %v398
    %v479 = vsub.f32 0.0, %v463
    %v480 = vsub.f32 0.0, %v464
    %v481 = vsub.f32 0.0, %v465
    %v482 = vsub.f32 0.0, %v466
    %v483 = vsub.f32 0.0, %v467
    %v484 = vsub.f32 0.0, %v468
    %v485 = vsub.f32 0.0, %v469
    %v486 = vsub.f32 0.0, %v470
    %v487 = vsub.f32 0.0, %v471
    %v488 = vsub.f32 0.0, %v472
    %v489 = vsub.f32 0.0, %v473
    %v490 = vsub.f32 0.0, %v474
    %v491 = vsub.f32 0.0, %v475
    %v492 = vsub.f32 0.0, %v476
    %v493 = vsub.f32 0.0, %v477
    %v494 = vsub.f32 0.0, %v478
    %495 = vxpose.xlu0.b32.start [1/16] %v479, 128
    %496 = vxpose.xlu0.b32.cont [2/16] %v480, 128
    %497 = vxpose.xlu0.b32.cont [3/16] %v481, 128
    %498 = vxpose.xlu0.b32.cont [4/16] %v482, 128
    %499 = vxpose.xlu0.b32.cont [5/16] %v483, 128
    %500 = vxpose.xlu0.b32.cont [6/16] %v484, 128
    %501 = vxpose.xlu0.b32.cont [7/16] %v485, 128
    %502 = vxpose.xlu0.b32.cont [8/16] %v486, 128
    %503 = vxpose.xlu0.b32.cont [9/16] %v487, 128
    %504 = vxpose.xlu0.b32.cont [10/16] %v488, 128
    %505 = vxpose.xlu0.b32.cont [11/16] %v489, 128
    %506 = vxpose.xlu0.b32.cont [12/16] %v490, 128
    %507 = vxpose.xlu0.b32.cont [13/16] %v491, 128
    %508 = vxpose.xlu0.b32.cont [14/16] %v492, 128
    %509 = vxpose.xlu0.b32.cont [15/16] %v493, 128
    %510 = vxpose.xlu0.b32.end [16/16] %v494, 128
    %v511 = vpop.trf.xlu0
    %v512 = vpop.trf.xlu0
    %v513 = vpop.trf.xlu0
    %v514 = vpop.trf.xlu0
    %v515 = vpop.trf.xlu0
    %v516 = vpop.trf.xlu0
    %v517 = vpop.trf.xlu0
    %v518 = vpop.trf.xlu0
    %v519 = vpop.trf.xlu0
    %v520 = vpop.trf.xlu0
    %v521 = vpop.trf.xlu0
    %v522 = vpop.trf.xlu0
    %v523 = vpop.trf.xlu0
    %v524 = vpop.trf.xlu0
    %v525 = vpop.trf.xlu0
    %v526 = vpop.trf.xlu0
    %527 = vst [vmem:[#allocation2] sm:$0x1] %v511
    // Predicated region
    $region10: #{tpu_custom_call.1} parent=1 // pred_check
      _
    $region11: #{tpu_custom_call.1} parent=1 // pred_check_branch
      %529 = sbr.rel (0) target = $region13
    $region12: #{tpu_custom_call.1} parent=1 // pred_region
      %s531 = ssub.s32 16, 16
      %532 = vsyncadd [#allocation3], %s531
      %s534 = sshll.u32 [#allocation2], 4
      %s535 = int_to_ptr.vmem [resolvable:$true] %s534
      %537 = dma.vmem_to_hbm [thread:$0]  %s535, 16, %s2, [#allocation3]
    $region13: #{tpu_custom_call.1} parent=1 // pred_fallthru
      _
    // Predicated region
    $region14: #{tpu_custom_call.1} parent=1 // pred_check
      _
    $region15: #{tpu_custom_call.1} parent=1 // pred_check_branch
      %539 = sbr.rel (0) target = $region17
    $region16: #{tpu_custom_call.1} parent=1 // pred_region
      %540 = dma.done [#allocation3], 16
    $region17: #{tpu_custom_call.1} parent=1 // pred_fallthru
      _
    %541 = vsyncpa [#allocation3], 1

</llo_original>
